<compile_context>
chip_gen: v7x
topology: tpu7x:2x2x1
jax: 0.10.0
libtpu: 0.0.40
codegen_flags: <defaults>
</compile_context>

<pallas_src>
import jax
import jax.numpy as jnp
from jax.experimental import pallas as pl
from jax.experimental.pallas import tpu as pltpu


def _round_up(x, m):
    return (x + m - 1) // m * m


def _make_kernel(compute_dtype):
    def kernel(a_ref, t_ref, wa_ref, ba_ref, wt_ref, bt_ref,
               wsel_ref, wr_ref, bo_ref, o_ref):
        # a_ref:  (TM, Da)            t_ref:  (TM, Dt)
        # wa_ref: (Da, HH)  [scale folded]    ba_ref: (1, HH) f32 [scale folded]
        # wt_ref: (Dt, HH)                    bt_ref: (1, HH) f32
        # wsel_ref: (HH, hidden)  exact 0/1 per-head sum selector (block diag)
        # wr_ref:   (Dt, hidden)  text_dim_reduction weight (cols [H:) filled)
        # bo_ref:   (1, hidden) f32            (cols [H:) filled)
        # o_ref:    (TM, hidden)
        a = a_ref[...].astype(compute_dtype)   # in-kernel cast: cheap VPU op on
        t = t_ref[...].astype(compute_dtype)   # an already-resident VMEM tile.

        # All H acoustic / text head projections as two big MXU matmuls.
        ap = jnp.dot(a, wa_ref[...], preferred_element_type=jnp.float32) + ba_ref[...]
        ta = jnp.dot(t, wt_ref[...], preferred_element_type=jnp.float32) + bt_ref[...]
        prod = (ap * ta).astype(compute_dtype)              # (TM, HH)

        # Per-head sum via the 0/1 selector (stays on the MXU, largest-K dot),
        # plus the text_dim_reduction folded into the same output tile.
        out = jnp.dot(prod, wsel_ref[...], preferred_element_type=jnp.float32)
        out = out + jnp.dot(t, wr_ref[...], preferred_element_type=jnp.float32)
        out = out + bo_ref[...]
        o_ref[...] = out.astype(o_ref.dtype)
    return kernel


def lasas_forward(acoustic, text, params, *, row_tile=1024, matmul_dtype=None):
    """acoustic: (B, T, Da), text: (B, T, Dt) -> (B, T, hidden_dim)."""
    B, T, Da = acoustic.shape
    Dt = text.shape[-1]
    wa, ba, wt, bt, wr, br = (params[k] for k in ("wa", "ba", "wt", "bt", "wr", "br"))
    H, _, hidden = wa.shape
    HH = H * hidden
    scale = 1.0 / ((hidden / H) ** 0.5)
    compute_dtype = jnp.float32 if matmul_dtype is None else matmul_dtype

    # ---- wrapper-side weight fusion (small, traced once per call) ----
    # Fold the 1/sqrt(hidden/H) scale into the acoustic path so wsel is 0/1.
    wa_f = (jnp.transpose(wa, (1, 0, 2)).reshape(Da, HH) * scale).astype(compute_dtype)
    ba_f = (ba.reshape(1, HH) * scale).astype(jnp.float32)
    wt_f = jnp.transpose(wt, (1, 0, 2)).reshape(Dt, HH).astype(compute_dtype)
    bt_f = bt.reshape(1, HH).astype(jnp.float32)

    head_of_col = jnp.repeat(jnp.arange(H), hidden)                         # (HH,)
    wsel = (head_of_col[:, None] == jnp.arange(hidden)[None, :]).astype(compute_dtype)

    wr_f = jnp.zeros((Dt, hidden), compute_dtype).at[:, H:].set(wr.astype(compute_dtype))
    bo_f = jnp.zeros((1, hidden), jnp.float32).at[:, H:].set(br.astype(jnp.float32))

    # ---- flatten tokens; adapt the row tile so tiny inputs aren't over-padded ----
    N = B * T
    tm = _round_up(max(8, min(row_tile, N)), 8)
    N_pad = _round_up(N, tm)
    a2 = acoustic.reshape(N, Da)
    t2 = text.reshape(N, Dt)
    if N_pad != N:
        a2 = jnp.pad(a2, ((0, N_pad - N), (0, 0)))
        t2 = jnp.pad(t2, ((0, N_pad - N), (0, 0)))

    out = pl.pallas_call(
        _make_kernel(compute_dtype),
        out_shape=jax.ShapeDtypeStruct((N_pad, hidden), jnp.float32),
        grid_spec=pltpu.PrefetchScalarGridSpec(
            num_scalar_prefetch=0,
            grid=(N_pad // tm,),
            in_specs=[
                pl.BlockSpec((tm, Da), lambda i: (i, 0)),
                pl.BlockSpec((tm, Dt), lambda i: (i, 0)),
                pl.BlockSpec((Da, HH), lambda i: (0, 0)),
                pl.BlockSpec((1, HH), lambda i: (0, 0)),
                pl.BlockSpec((Dt, HH), lambda i: (0, 0)),
                pl.BlockSpec((1, HH), lambda i: (0, 0)),
                pl.BlockSpec((HH, hidden), lambda i: (0, 0)),
                pl.BlockSpec((Dt, hidden), lambda i: (0, 0)),
                pl.BlockSpec((1, hidden), lambda i: (0, 0)),
            ],
            out_specs=pl.BlockSpec((tm, hidden), lambda i: (i, 0)),
        ),
        compiler_params=pltpu.CompilerParams(
            dimension_semantics=("parallel",),
            vmem_limit_bytes=32 * 1024 * 1024,
        ),
    )(a2, t2, wa_f, ba_f, wt_f, bt_f, wsel, wr_f, bo_f)

    if N_pad != N:
        out = out[:N]
    return out.reshape(B, T, hidden)


def init_params(key, acoustic_dim, text_dim, hidden_dim, num_heads):
    ks = jax.random.split(key, 6)
    wa = jax.random.normal(ks[0], (num_heads, acoustic_dim, hidden_dim), jnp.float32) * 0.1
    ba = jax.random.normal(ks[1], (num_heads, hidden_dim), jnp.float32) * 0.01
    wt = jax.random.normal(ks[2], (num_heads, text_dim, hidden_dim), jnp.float32) * 0.1
    bt = jax.random.normal(ks[3], (num_heads, hidden_dim), jnp.float32) * 0.01
    wr = jax.random.normal(ks[4], (text_dim, hidden_dim - num_heads), jnp.float32) * 0.1
    br = jax.random.normal(ks[5], (1, hidden_dim - num_heads), jnp.float32) * 0.01
    return dict(wa=wa, ba=ba, wt=wt, bt=bt, wr=wr, br=br)


def lasas_reference(acoustic, text, params):
    """Pure-JAX reference mirroring the PyTorch forward."""
    wa, ba, wt, bt, wr, br = (params[k] for k in ("wa", "ba", "wt", "bt", "wr", "br"))
    H, _, hidden = wa.shape
    sims = []
    for h in range(H):
        ap = acoustic @ wa[h] + ba[h]
        ta = text @ wt[h] + bt[h]
        sim = jnp.sum(ta * ap, axis=-1) / ((hidden / H) ** 0.5)
        sims.append(sim[..., None])
    accent_shift = jnp.concatenate(sims, axis=-1)
    reduced_text = text @ wr + br[0]
    return jnp.concatenate([accent_shift, reduced_text], axis=-1)


if __name__ == "__main__":
    B, T = 2, 8
    acoustic_dim, text_dim, hidden_dim, num_heads = 16, 32, 32, 8

    key = jax.random.PRNGKey(0)
    k_a, k_t, k_p = jax.random.split(key, 3)
    acoustic = jax.random.normal(k_a, (B, T, acoustic_dim), jnp.float32)
    text = jax.random.normal(k_t, (B, T, text_dim), jnp.float32)
    params = init_params(k_p, acoustic_dim, text_dim, hidden_dim, num_heads)

    ref = lasas_reference(acoustic, text, params)

    # Default f32 path: must match the reference tightly.
    out = jax.block_until_ready(lasas_forward(acoustic, text, params))
    assert out.shape == (B, T, hidden_dim)
    assert jnp.allclose(out, ref, atol=1e-4, rtol=1e-4)

    # bf16 MXU path (f32 accumulation): exercised with a loose tolerance.
    out_bf16 = jax.block_until_ready(
        lasas_forward(acoustic, text, params, matmul_dtype=jnp.bfloat16))
    assert out_bf16.shape == (B, T, hidden_dim)
    assert jnp.allclose(out_bf16, ref, atol=1e-1, rtol=1e-1)

    print("KERNEL_OK")
</pallas_src>

<mosaic_0001>
module attributes {stable_mosaic.version = 11 : i64} {
  func.func @kernel(%arg0: i32, %arg1: memref<16x16xf32, #tpu.memory_space<vmem>>, %arg2: memref<16x32xf32, #tpu.memory_space<vmem>>, %arg3: memref<16x256xf32, #tpu.memory_space<vmem>>, %arg4: memref<1x256xf32, #tpu.memory_space<vmem>>, %arg5: memref<32x256xf32, #tpu.memory_space<vmem>>, %arg6: memref<1x256xf32, #tpu.memory_space<vmem>>, %arg7: memref<256x32xf32, #tpu.memory_space<vmem>>, %arg8: memref<32x32xf32, #tpu.memory_space<vmem>>, %arg9: memref<1x32xf32, #tpu.memory_space<vmem>>, %arg10: memref<16x32xf32, #tpu.memory_space<vmem>>) attributes {dimension_semantics = [#tpu.dimension_semantics<parallel>], iteration_bounds = array<i64: 1>, scalar_prefetch = 0 : i64, scratch_operands = 0 : i64, tpu.core_type = #tpu.core_type<tc>, window_params = [{transform_indices = @transform_0, window_bounds = array<i64: 16, 16>}, {transform_indices = @transform_1, window_bounds = array<i64: 16, 32>}, {pipeline_mode = #tpu.pipeline_mode<synchronous>, transform_indices = @transform_2, window_bounds = array<i64: 16, 256>}, {pipeline_mode = #tpu.pipeline_mode<synchronous>, transform_indices = @transform_3, window_bounds = array<i64: 1, 256>}, {pipeline_mode = #tpu.pipeline_mode<synchronous>, transform_indices = @transform_4, window_bounds = array<i64: 32, 256>}, {pipeline_mode = #tpu.pipeline_mode<synchronous>, transform_indices = @transform_5, window_bounds = array<i64: 1, 256>}, {pipeline_mode = #tpu.pipeline_mode<synchronous>, transform_indices = @transform_6, window_bounds = array<i64: 256, 32>}, {pipeline_mode = #tpu.pipeline_mode<synchronous>, transform_indices = @transform_7, window_bounds = array<i64: 32, 32>}, {pipeline_mode = #tpu.pipeline_mode<synchronous>, transform_indices = @transform_8, window_bounds = array<i64: 1, 32>}, {transform_indices = @transform_9, window_bounds = array<i64: 16, 32>}]} {
    %c0 = arith.constant 0 : index
    %c0_0 = arith.constant 0 : index
    %0 = vector.load %arg1[%c0, %c0_0] : memref<16x16xf32, #tpu.memory_space<vmem>>, vector<16x16xf32>
    %c0_1 = arith.constant 0 : index
    %c0_2 = arith.constant 0 : index
    %1 = vector.load %arg2[%c0_1, %c0_2] : memref<16x32xf32, #tpu.memory_space<vmem>>, vector<16x32xf32>
    %c0_3 = arith.constant 0 : index
    %c0_4 = arith.constant 0 : index
    %2 = vector.load %arg3[%c0_3, %c0_4] : memref<16x256xf32, #tpu.memory_space<vmem>>, vector<16x256xf32>
    %cst = arith.constant dense<0.000000e+00> : vector<16x256xf32>
    %3 = tpu.matmul %0, %2, %cst {dimension_numbers = #tpu.dot_dimension_numbers<[1], [0], [0], [1], [0, 0, 1, 1], [], []>} : vector<16x16xf32>, vector<16x256xf32>, vector<16x256xf32> -> vector<16x256xf32>
    %c0_5 = arith.constant 0 : index
    %c0_6 = arith.constant 0 : index
    %4 = vector.load %arg4[%c0_5, %c0_6] : memref<1x256xf32, #tpu.memory_space<vmem>>, vector<1x256xf32>
    %5 = vector.broadcast %4 : vector<1x256xf32> to vector<16x256xf32>
    %6 = arith.addf %3, %5 : vector<16x256xf32>
    %c0_7 = arith.constant 0 : index
    %c0_8 = arith.constant 0 : index
    %7 = vector.load %arg5[%c0_7, %c0_8] : memref<32x256xf32, #tpu.memory_space<vmem>>, vector<32x256xf32>
    %cst_9 = arith.constant dense<0.000000e+00> : vector<16x256xf32>
    %8 = tpu.matmul %1, %7, %cst_9 {dimension_numbers = #tpu.dot_dimension_numbers<[1], [0], [0], [1], [0, 0, 1, 1], [], []>} : vector<16x32xf32>, vector<32x256xf32>, vector<16x256xf32> -> vector<16x256xf32>
    %c0_10 = arith.constant 0 : index
    %c0_11 = arith.constant 0 : index
    %9 = vector.load %arg6[%c0_10, %c0_11] : memref<1x256xf32, #tpu.memory_space<vmem>>, vector<1x256xf32>
    %10 = vector.broadcast %9 : vector<1x256xf32> to vector<16x256xf32>
    %11 = arith.addf %8, %10 : vector<16x256xf32>
    %12 = arith.mulf %6, %11 : vector<16x256xf32>
    %c0_12 = arith.constant 0 : index
    %c0_13 = arith.constant 0 : index
    %13 = vector.load %arg7[%c0_12, %c0_13] : memref<256x32xf32, #tpu.memory_space<vmem>>, vector<256x32xf32>
    %cst_14 = arith.constant dense<0.000000e+00> : vector<16x32xf32>
    %14 = tpu.matmul %12, %13, %cst_14 {dimension_numbers = #tpu.dot_dimension_numbers<[1], [0], [0], [1], [0, 0, 1, 1], [], []>} : vector<16x256xf32>, vector<256x32xf32>, vector<16x32xf32> -> vector<16x32xf32>
    %c0_15 = arith.constant 0 : index
    %c0_16 = arith.constant 0 : index
    %15 = vector.load %arg8[%c0_15, %c0_16] : memref<32x32xf32, #tpu.memory_space<vmem>>, vector<32x32xf32>
    %cst_17 = arith.constant dense<0.000000e+00> : vector<16x32xf32>
    %16 = tpu.matmul %1, %15, %cst_17 {dimension_numbers = #tpu.dot_dimension_numbers<[1], [0], [0], [1], [0, 0, 1, 1], [], []>} : vector<16x32xf32>, vector<32x32xf32>, vector<16x32xf32> -> vector<16x32xf32>
    %17 = arith.addf %14, %16 : vector<16x32xf32>
    %c0_18 = arith.constant 0 : index
    %c0_19 = arith.constant 0 : index
    %18 = vector.load %arg9[%c0_18, %c0_19] : memref<1x32xf32, #tpu.memory_space<vmem>>, vector<1x32xf32>
    %19 = vector.broadcast %18 : vector<1x32xf32> to vector<16x32xf32>
    %20 = arith.addf %17, %19 : vector<16x32xf32>
    %c0_20 = arith.constant 0 : index
    %c0_21 = arith.constant 0 : index
    %21 = vector.load %arg10[%c0_20, %c0_21] : memref<16x32xf32, #tpu.memory_space<vmem>>, vector<16x32xf32>
    tpu.vector_store %arg10[%c0_20, %c0_21], %20 {strides = array<i32>} : memref<16x32xf32, #tpu.memory_space<vmem>>, vector<16x32xf32>,
    return
  }
  func.func @transform_0(%arg0: i32) -> (i32, i32) {
    %c0_i32 = arith.constant 0 : i32
    %c0_i32_0 = arith.constant 0 : i32
    return %arg0, %c0_i32 : i32, i32
  }
  func.func @transform_1(%arg0: i32) -> (i32, i32) {
    %c0_i32 = arith.constant 0 : i32
    %c0_i32_0 = arith.constant 0 : i32
    return %arg0, %c0_i32 : i32, i32
  }
  func.func @transform_2(%arg0: i32) -> (i32, i32) {
    %c0_i32 = arith.constant 0 : i32
    %c0_i32_0 = arith.constant 0 : i32
    %c0_i32_1 = arith.constant 0 : i32
    return %c0_i32, %c0_i32_0 : i32, i32
  }
  func.func @transform_3(%arg0: i32) -> (i32, i32) {
    %c0_i32 = arith.constant 0 : i32
    %c0_i32_0 = arith.constant 0 : i32
    %c0_i32_1 = arith.constant 0 : i32
    return %c0_i32, %c0_i32_0 : i32, i32
  }
  func.func @transform_4(%arg0: i32) -> (i32, i32) {
    %c0_i32 = arith.constant 0 : i32
    %c0_i32_0 = arith.constant 0 : i32
    %c0_i32_1 = arith.constant 0 : i32
    return %c0_i32, %c0_i32_0 : i32, i32
  }
  func.func @transform_5(%arg0: i32) -> (i32, i32) {
    %c0_i32 = arith.constant 0 : i32
    %c0_i32_0 = arith.constant 0 : i32
    %c0_i32_1 = arith.constant 0 : i32
    return %c0_i32, %c0_i32_0 : i32, i32
  }
  func.func @transform_6(%arg0: i32) -> (i32, i32) {
    %c0_i32 = arith.constant 0 : i32
    %c0_i32_0 = arith.constant 0 : i32
    %c0_i32_1 = arith.constant 0 : i32
    return %c0_i32, %c0_i32_0 : i32, i32
  }
  func.func @transform_7(%arg0: i32) -> (i32, i32) {
    %c0_i32 = arith.constant 0 : i32
    %c0_i32_0 = arith.constant 0 : i32
    %c0_i32_1 = arith.constant 0 : i32
    return %c0_i32, %c0_i32_0 : i32, i32
  }
  func.func @transform_8(%arg0: i32) -> (i32, i32) {
    %c0_i32 = arith.constant 0 : i32
    %c0_i32_0 = arith.constant 0 : i32
    %c0_i32_1 = arith.constant 0 : i32
    return %c0_i32, %c0_i32_0 : i32, i32
  }
  func.func @transform_9(%arg0: i32) -> (i32, i32) {
    %c0_i32 = arith.constant 0 : i32
    %c0_i32_0 = arith.constant 0 : i32
    return %arg0, %c0_i32 : i32, i32
  }
}

</mosaic_0001>

<llo_original>
// kernel: tpu_custom_call.1
$region0: #{tpu_custom_call.1}
  #allocation0 [shape = 'u32[]', space=smem, size = 0x4, offset = 0x4, fixed_abs, tag = 'smem constant byte address 0x4 - core index']
  #allocation1 [shape = 'u32[144,128]{1,0:T(1,128)}', space=vmem, size = 0x12000, scoped, tag = 'internal scratch']
  %s0 = inlined_call_operand.vmem [shape: f32[16,16], index: 0, kind: input, shape index: {}]
  %s1 = inlined_call_operand.vmem [shape: f32[16,32], index: 1, kind: input, shape index: {}]
  %s2 = inlined_call_operand.vmem [shape: f32[16,256], index: 2, kind: input, shape index: {}]
  %s3 = inlined_call_operand.vmem [shape: f32[1,256], index: 3, kind: input, shape index: {}]
  %s4 = inlined_call_operand.vmem [shape: f32[32,256], index: 4, kind: input, shape index: {}]
  %s5 = inlined_call_operand.vmem [shape: f32[1,256], index: 5, kind: input, shape index: {}]
  %s6 = inlined_call_operand.vmem [shape: f32[256,32], index: 6, kind: input, shape index: {}]
  %s7 = inlined_call_operand.vmem [shape: f32[32,32], index: 7, kind: input, shape index: {}]
  %s8 = inlined_call_operand.vmem [shape: f32[1,32], index: 8, kind: input, shape index: {}]
  %s9 = inlined_call_operand.hbm [shape: f32[16,32], index: 9, kind: output, shape index: {}]
  %s10 = sld [smem:[#allocation0]]
  $region46: #{tpu_custom_call.1} parent=0
    _
  %s12 = ssub.s32 1, %s10
  %s13 = scalar_select 0, %s12, %s10
  $region1: #{tpu_custom_call.1} parent=0
    #allocation2 [shape = 'u8[8192]{0}', space=vmem, size = 0x2000, scoped, tag = 'output window, operand 0, single buffered']
    #allocation3 [shape = 's32[1]{0}', space=sflag, size = 0x4, scoped, tag = 'scoped memory for tpu_custom_call.1']
    %14 = vsyncpa [#allocation3], 0
    // Predicated region
    $region2: #{tpu_custom_call.1} parent=1 // pred_check
      _
    $region3: #{tpu_custom_call.1} parent=1 // pred_check_branch
      %16 = sbr.rel (0) target = $region5
    $region4: #{tpu_custom_call.1} parent=1 // pred_region
      _
    $region5: #{tpu_custom_call.1} parent=1 // pred_fallthru
      _
    // Predicated region
    $region6: #{tpu_custom_call.1} parent=1 // pred_check
      _
    $region7: #{tpu_custom_call.1} parent=1 // pred_check_branch
      %18 = sbr.rel (0) target = $region9
    $region8: #{tpu_custom_call.1} parent=1 // pred_region
      _
    $region9: #{tpu_custom_call.1} parent=1 // pred_fallthru
      _
    // Predicated region
    $region10: #{tpu_custom_call.1} parent=1 // pred_check
      _
    $region11: #{tpu_custom_call.1} parent=1 // pred_check_branch
      %20 = sbr.rel (0) target = $region13
    $region12: #{tpu_custom_call.1} parent=1 // pred_region
      _
    $region13: #{tpu_custom_call.1} parent=1 // pred_fallthru
      _
    // Predicated region
    $region14: #{tpu_custom_call.1} parent=1 // pred_check
      _
    $region15: #{tpu_custom_call.1} parent=1 // pred_check_branch
      %22 = sbr.rel (0) target = $region17
    $region16: #{tpu_custom_call.1} parent=1 // pred_region
      _
    $region17: #{tpu_custom_call.1} parent=1 // pred_fallthru
      _
    // Predicated region
    $region18: #{tpu_custom_call.1} parent=1 // pred_check
      _
    $region19: #{tpu_custom_call.1} parent=1 // pred_check_branch
      %24 = sbr.rel (0) target = $region21
    $region20: #{tpu_custom_call.1} parent=1 // pred_region
      _
    $region21: #{tpu_custom_call.1} parent=1 // pred_fallthru
      _
    // Predicated region
    $region22: #{tpu_custom_call.1} parent=1 // pred_check
      _
    $region23: #{tpu_custom_call.1} parent=1 // pred_check_branch
      %26 = sbr.rel (0) target = $region25
    $region24: #{tpu_custom_call.1} parent=1 // pred_region
      _
    $region25: #{tpu_custom_call.1} parent=1 // pred_fallthru
      _
    // Predicated region
    $region26: #{tpu_custom_call.1} parent=1 // pred_check
      _
    $region27: #{tpu_custom_call.1} parent=1 // pred_check_branch
      %28 = sbr.rel (0) target = $region29
    $region28: #{tpu_custom_call.1} parent=1 // pred_region
      _
    $region29: #{tpu_custom_call.1} parent=1 // pred_fallthru
      _
    // Predicated region
    $region30: #{tpu_custom_call.1} parent=1 // pred_check
      _
    $region31: #{tpu_custom_call.1} parent=1 // pred_check_branch
      %30 = sbr.rel (0) target = $region33
    $region32: #{tpu_custom_call.1} parent=1 // pred_region
      _
    $region33: #{tpu_custom_call.1} parent=1 // pred_fallthru
      _
    // Predicated region
    $region34: #{tpu_custom_call.1} parent=1 // pred_check
      _
    $region35: #{tpu_custom_call.1} parent=1 // pred_check_branch
      %32 = sbr.rel (0) target = $region37
    $region36: #{tpu_custom_call.1} parent=1 // pred_region
      _
    $region37: #{tpu_custom_call.1} parent=1 // pred_fallthru
      _
    %v33 = vld [vmem:[%s0] sm:$0xff]
    %v34 = vld [vmem:[%s0 + $0x8] sm:$0xff]
    %v35 = vld [vmem:[%s1] sm:$0xff]
    %v36 = vld [vmem:[%s1 + $0x8] sm:$0xff]
    %v37 = vld [vmem:[%s2] sm:$0xff]
    %v38 = vld [vmem:[%s2 + $0x8] sm:$0xff]
    %v39 = vld [vmem:[%s2 + $0x10] sm:$0xff]
    %v40 = vld [vmem:[%s2 + $0x18] sm:$0xff]
    %v41 = vld [vmem:[%s3] sm:$0x3]
    %v43 = vlaneseq
    %v44 = vshrl.u32 %v43, 7
    %v45 = vsub.s32 0, %v44
    %v46 = vrot.slane %v41, %v45
    %v47 = vlaneseq
    %v48 = vshrl.u32 %v47, 7
    %v49 = vsub.s32 1, %v48
    %v50 = vrot.slane %v41, %v49
    %vm53 = vcmask 130048
    %v55 = vsel %vm53, %v33, 0
    %v58 = vsel %vm53, %v34, 0
    %60 = vmatprep.subr.mxu0 %v38
    %61 = vmatpush1.msra.mxu0 %v37
    %62 = vmatprep.subr.mxu0 %v40
    %63 = vmatpush1.msra.mxu0 %v39
    %64 = vmatprep.subr.mxu0 0.0
    %65 = vmatpush1.msra.mxu0 0.0
    %66 = vmatprep.subr.mxu0 0.0
    %67 = vmatpush1.msra.mxu0 0.0
    %68 = vmatprep.subr.mxu0 0.0
    %69 = vmatpush1.msra.mxu0 0.0
    %70 = vmatprep.subr.mxu0 0.0
    %71 = vmatpush1.msra.mxu0 0.0
    %72 = vmatprep.subr.mxu0 0.0
    %73 = vmatpush1.msra.mxu0 0.0
    %74 = vmatprep.subr.mxu0 0.0
    %75 = vmatpush1.msra.mxu0 0.0
    %76 = vmatprep.subr.mxu0 0.0
    %77 = vmatpush1.msra.mxu0 0.0
    %78 = vmatprep.subr.mxu0 0.0
    %79 = vmatpush1.msra.mxu0 0.0
    %80 = vmatprep.subr.mxu0 0.0
    %81 = vmatpush1.msra.mxu0 0.0
    %82 = vmatprep.subr.mxu0 0.0
    %83 = vmatpush1.msra.mxu0 0.0
    %84 = vmatprep.subr.mxu0 0.0
    %85 = vmatpush1.msra.mxu0 0.0
    %86 = vmatprep.subr.mxu0 0.0
    %87 = vmatpush1.msra.mxu0 0.0
    %88 = vmatprep.subr.mxu0 0.0
    %89 = vmatpush1.msra.mxu0 0.0
    %90 = vmatprep.subr.mxu0 0.0
    %91 = vmatpush1.msra.mxu0 0.0
    %92 = vmatprep.subr.mxu0 0.0
    %93 = vmatpush1.msra.mxu0 0.0
    %94 = vmatprep.subr.mxu0 0.0
    %95 = vmatpush1.msra.mxu0 0.0
    %96 = vmatprep.subr.mxu0 0.0
    %97 = vmatpush1.msra.mxu0 0.0
    %98 = vmatprep.subr.mxu0 0.0
    %99 = vmatpush1.msra.mxu0 0.0
    %100 = vmatprep.subr.mxu0 0.0
    %101 = vmatpush1.msra.mxu0 0.0
    %102 = vmatprep.subr.mxu0 0.0
    %103 = vmatpush1.msra.mxu0 0.0
    %104 = vmatprep.subr.mxu0 0.0
    %105 = vmatpush1.msra.mxu0 0.0
    %106 = vmatprep.subr.mxu0 0.0
    %107 = vmatpush1.msra.mxu0 0.0
    %108 = vmatprep.subr.mxu0 0.0
    %109 = vmatpush1.msra.mxu0 0.0
    %110 = vmatprep.subr.mxu0 0.0
    %111 = vmatpush1.msra.mxu0 0.0
    %112 = vmatprep.subr.mxu0 0.0
    %113 = vmatpush1.msra.mxu0 0.0
    %114 = vmatprep.subr.mxu0 0.0
    %115 = vmatpush1.msra.mxu0 0.0
    %116 = vmatprep.subr.mxu0 0.0
    %117 = vmatpush1.msra.mxu0 0.0
    %118 = vmatprep.subr.mxu0 0.0
    %119 = vmatpush1.msra.mxu0 0.0
    %120 = vmatprep.subr.mxu0 0.0
    %121 = vmatpush1.msra.mxu0 0.0
    %122 = vmatprep.subr.mxu0 0.0
    %123 = vmatpush1.msra.mxu0 0.0
    %124 = vmatprep.mubr.f32.mxu0 0.0
    %125 = vmatmul.mubr.f32.gmra.mrb[0].mxu0 %v55
    %v126 = vpop.f32.mrb[0].mxu0
    %v127 = vadd.f32 %v46, %v126
    %v128 = vpop.f32.mrb[0].mxu0
    %v129 = vadd.f32 %v50, %v128
    %130 = vmatprep.mubr.f32.mxu0 0.0
    %131 = vmatmul.mubr.f32.gmra.mrb[0].mxu0 %v58
    %v132 = vpop.f32.mrb[0].mxu0
    %v133 = vadd.f32 %v46, %v132
    %v134 = vpop.f32.mrb[0].mxu0
    %v135 = vadd.f32 %v50, %v134
    %136 = vdwg.mxu0
    %v137 = vld [vmem:[%s4] sm:$0xff]
    %v138 = vld [vmem:[%s4 + $0x8] sm:$0xff]
    %v139 = vld [vmem:[%s4 + $0x10] sm:$0xff]
    %v140 = vld [vmem:[%s4 + $0x18] sm:$0xff]
    %v141 = vld [vmem:[%s4 + $0x20] sm:$0xff]
    %v142 = vld [vmem:[%s4 + $0x28] sm:$0xff]
    %v143 = vld [vmem:[%s4 + $0x30] sm:$0xff]
    %v144 = vld [vmem:[%s4 + $0x38] sm:$0xff]
    %v145 = vld [vmem:[%s5] sm:$0x3]
    %v147 = vlaneseq
    %v148 = vshrl.u32 %v147, 7
    %v149 = vsub.s32 0, %v148
    %v150 = vrot.slane %v145, %v149
    %v151 = vlaneseq
    %v152 = vshrl.u32 %v151, 7
    %v153 = vsub.s32 1, %v152
    %v154 = vrot.slane %v145, %v153
    %vm157 = vcmask 261120
    %v159 = vsel %vm157, %v35, 0
    %v162 = vsel %vm157, %v36, 0
    %164 = vmatprep.subr.mxu0 %v138
    %165 = vmatpush1.msra.mxu0 %v137
    %166 = vmatprep.subr.mxu0 %v140
    %167 = vmatpush1.msra.mxu0 %v139
    %168 = vmatprep.subr.mxu0 %v142
    %169 = vmatpush1.msra.mxu0 %v141
    %170 = vmatprep.subr.mxu0 %v144
    %171 = vmatpush1.msra.mxu0 %v143
    %172 = vmatprep.subr.mxu0 0.0
    %173 = vmatpush1.msra.mxu0 0.0
    %174 = vmatprep.subr.mxu0 0.0
    %175 = vmatpush1.msra.mxu0 0.0
    %176 = vmatprep.subr.mxu0 0.0
    %177 = vmatpush1.msra.mxu0 0.0
    %178 = vmatprep.subr.mxu0 0.0
    %179 = vmatpush1.msra.mxu0 0.0
    %180 = vmatprep.subr.mxu0 0.0
    %181 = vmatpush1.msra.mxu0 0.0
    %182 = vmatprep.subr.mxu0 0.0
    %183 = vmatpush1.msra.mxu0 0.0
    %184 = vmatprep.subr.mxu0 0.0
    %185 = vmatpush1.msra.mxu0 0.0
    %186 = vmatprep.subr.mxu0 0.0
    %187 = vmatpush1.msra.mxu0 0.0
    %188 = vmatprep.subr.mxu0 0.0
    %189 = vmatpush1.msra.mxu0 0.0
    %190 = vmatprep.subr.mxu0 0.0
    %191 = vmatpush1.msra.mxu0 0.0
    %192 = vmatprep.subr.mxu0 0.0
    %193 = vmatpush1.msra.mxu0 0.0
    %194 = vmatprep.subr.mxu0 0.0
    %195 = vmatpush1.msra.mxu0 0.0
    %196 = vmatprep.subr.mxu0 0.0
    %197 = vmatpush1.msra.mxu0 0.0
    %198 = vmatprep.subr.mxu0 0.0
    %199 = vmatpush1.msra.mxu0 0.0
    %200 = vmatprep.subr.mxu0 0.0
    %201 = vmatpush1.msra.mxu0 0.0
    %202 = vmatprep.subr.mxu0 0.0
    %203 = vmatpush1.msra.mxu0 0.0
    %204 = vmatprep.subr.mxu0 0.0
    %205 = vmatpush1.msra.mxu0 0.0
    %206 = vmatprep.subr.mxu0 0.0
    %207 = vmatpush1.msra.mxu0 0.0
    %208 = vmatprep.subr.mxu0 0.0
    %209 = vmatpush1.msra.mxu0 0.0
    %210 = vmatprep.subr.mxu0 0.0
    %211 = vmatpush1.msra.mxu0 0.0
    %212 = vmatprep.subr.mxu0 0.0
    %213 = vmatpush1.msra.mxu0 0.0
    %214 = vmatprep.subr.mxu0 0.0
    %215 = vmatpush1.msra.mxu0 0.0
    %216 = vmatprep.subr.mxu0 0.0
    %217 = vmatpush1.msra.mxu0 0.0
    %218 = vmatprep.subr.mxu0 0.0
    %219 = vmatpush1.msra.mxu0 0.0
    %220 = vmatprep.subr.mxu0 0.0
    %221 = vmatpush1.msra.mxu0 0.0
    %222 = vmatprep.subr.mxu0 0.0
    %223 = vmatpush1.msra.mxu0 0.0
    %224 = vmatprep.subr.mxu0 0.0
    %225 = vmatpush1.msra.mxu0 0.0
    %226 = vmatprep.subr.mxu0 0.0
    %227 = vmatpush1.msra.mxu0 0.0
    %228 = vmatprep.mubr.f32.mxu0 0.0
    %229 = vmatmul.mubr.f32.gmra.mrb[0].mxu0 %v159
    %v230 = vpop.f32.mrb[0].mxu0
    %v231 = vadd.f32 %v150, %v230
    %v232 = vpop.f32.mrb[0].mxu0
    %v233 = vadd.f32 %v154, %v232
    %234 = vmatprep.mubr.f32.mxu0 0.0
    %235 = vmatmul.mubr.f32.gmra.mrb[0].mxu0 %v162
    %v236 = vpop.f32.mrb[0].mxu0
    %v237 = vadd.f32 %v150, %v236
    %v238 = vpop.f32.mrb[0].mxu0
    %v239 = vadd.f32 %v154, %v238
    %240 = vdwg.mxu0
    %v241 = vmul.f32 %v127, %v231
    %v242 = vmul.f32 %v129, %v233
    %v243 = vmul.f32 %v133, %v237
    %v244 = vmul.f32 %v135, %v239
    %v245 = vld [vmem:[%s6] sm:$0xff]
    %v246 = vld [vmem:[%s6 + $0x8] sm:$0xff]
    %v247 = vld [vmem:[%s6 + $0x10] sm:$0xff]
    %v248 = vld [vmem:[%s6 + $0x18] sm:$0xff]
    %v249 = vld [vmem:[%s6 + $0x20] sm:$0xff]
    %v250 = vld [vmem:[%s6 + $0x28] sm:$0xff]
    %v251 = vld [vmem:[%s6 + $0x30] sm:$0xff]
    %v252 = vld [vmem:[%s6 + $0x38] sm:$0xff]
    %v253 = vld [vmem:[%s6 + $0x40] sm:$0xff]
    %v254 = vld [vmem:[%s6 + $0x48] sm:$0xff]
    %v255 = vld [vmem:[%s6 + $0x50] sm:$0xff]
    %v256 = vld [vmem:[%s6 + $0x58] sm:$0xff]
    %v257 = vld [vmem:[%s6 + $0x60] sm:$0xff]
    %v258 = vld [vmem:[%s6 + $0x68] sm:$0xff]
    %v259 = vld [vmem:[%s6 + $0x70] sm:$0xff]
    %v260 = vld [vmem:[%s6 + $0x78] sm:$0xff]
    %v261 = vld [vmem:[%s6 + $0x80] sm:$0xff]
    %v262 = vld [vmem:[%s6 + $0x88] sm:$0xff]
    %v263 = vld [vmem:[%s6 + $0x90] sm:$0xff]
    %v264 = vld [vmem:[%s6 + $0x98] sm:$0xff]
    %v265 = vld [vmem:[%s6 + $0xa0] sm:$0xff]
    %v266 = vld [vmem:[%s6 + $0xa8] sm:$0xff]
    %v267 = vld [vmem:[%s6 + $0xb0] sm:$0xff]
    %v268 = vld [vmem:[%s6 + $0xb8] sm:$0xff]
    %v269 = vld [vmem:[%s6 + $0xc0] sm:$0xff]
    %v270 = vld [vmem:[%s6 + $0xc8] sm:$0xff]
    %v271 = vld [vmem:[%s6 + $0xd0] sm:$0xff]
    %v272 = vld [vmem:[%s6 + $0xd8] sm:$0xff]
    %v273 = vld [vmem:[%s6 + $0xe0] sm:$0xff]
    %v274 = vld [vmem:[%s6 + $0xe8] sm:$0xff]
    %v275 = vld [vmem:[%s6 + $0xf0] sm:$0xff]
    %v276 = vld [vmem:[%s6 + $0xf8] sm:$0xff]
    %v277 = vld [vmem:[%s7] sm:$0xff]
    %v278 = vld [vmem:[%s7 + $0x8] sm:$0xff]
    %v279 = vld [vmem:[%s7 + $0x10] sm:$0xff]
    %v280 = vld [vmem:[%s7 + $0x18] sm:$0xff]
    %281 = vmatprep.subr.mxu0 0.0
    %282 = vmatpush1.msra.mxu0 %v277
    %283 = vmatprep.subr.mxu0 0.0
    %284 = vmatpush1.msra.mxu0 %v278
    %285 = vmatprep.subr.mxu0 0.0
    %286 = vmatpush1.msra.mxu0 %v279
    %287 = vmatprep.subr.mxu0 0.0
    %288 = vmatpush1.msra.mxu0 %v280
    %289 = vmatprep.subr.mxu0 0.0
    %290 = vmatpush1.msra.mxu0 0.0
    %291 = vmatprep.subr.mxu0 0.0
    %292 = vmatpush1.msra.mxu0 0.0
    %293 = vmatprep.subr.mxu0 0.0
    %294 = vmatpush1.msra.mxu0 0.0
    %295 = vmatprep.subr.mxu0 0.0
    %296 = vmatpush1.msra.mxu0 0.0
    %297 = vmatprep.subr.mxu0 0.0
    %298 = vmatpush1.msra.mxu0 0.0
    %299 = vmatprep.subr.mxu0 0.0
    %300 = vmatpush1.msra.mxu0 0.0
    %301 = vmatprep.subr.mxu0 0.0
    %302 = vmatpush1.msra.mxu0 0.0
    %303 = vmatprep.subr.mxu0 0.0
    %304 = vmatpush1.msra.mxu0 0.0
    %305 = vmatprep.subr.mxu0 0.0
    %306 = vmatpush1.msra.mxu0 0.0
    %307 = vmatprep.subr.mxu0 0.0
    %308 = vmatpush1.msra.mxu0 0.0
    %309 = vmatprep.subr.mxu0 0.0
    %310 = vmatpush1.msra.mxu0 0.0
    %311 = vmatprep.subr.mxu0 0.0
    %312 = vmatpush1.msra.mxu0 0.0
    %313 = vmatprep.subr.mxu0 0.0
    %314 = vmatpush1.msra.mxu0 0.0
    %315 = vmatprep.subr.mxu0 0.0
    %316 = vmatpush1.msra.mxu0 0.0
    %317 = vmatprep.subr.mxu0 0.0
    %318 = vmatpush1.msra.mxu0 0.0
    %319 = vmatprep.subr.mxu0 0.0
    %320 = vmatpush1.msra.mxu0 0.0
    %321 = vmatprep.subr.mxu0 0.0
    %322 = vmatpush1.msra.mxu0 0.0
    %323 = vmatprep.subr.mxu0 0.0
    %324 = vmatpush1.msra.mxu0 0.0
    %325 = vmatprep.subr.mxu0 0.0
    %326 = vmatpush1.msra.mxu0 0.0
    %327 = vmatprep.subr.mxu0 0.0
    %328 = vmatpush1.msra.mxu0 0.0
    %329 = vmatprep.subr.mxu0 0.0
    %330 = vmatpush1.msra.mxu0 0.0
    %331 = vmatprep.subr.mxu0 0.0
    %332 = vmatpush1.msra.mxu0 0.0
    %333 = vmatprep.subr.mxu0 0.0
    %334 = vmatpush1.msra.mxu0 0.0
    %335 = vmatprep.subr.mxu0 0.0
    %336 = vmatpush1.msra.mxu0 0.0
    %337 = vmatprep.subr.mxu0 0.0
    %338 = vmatpush1.msra.mxu0 0.0
    %339 = vmatprep.subr.mxu0 0.0
    %340 = vmatpush1.msra.mxu0 0.0
    %341 = vmatprep.subr.mxu0 0.0
    %342 = vmatpush1.msra.mxu0 0.0
    %343 = vmatprep.subr.mxu0 0.0
    %344 = vmatpush1.msra.mxu0 0.0
    %345 = vmatprep.mubr.f32.mxu0 0.0
    %346 = vmatmul.mubr.f32.gmra.mrb[0].mxu0 %v159
    %v347 = vpop.f32.mrb[0].mxu0
    %v348 = vadd.f32 0.0, %v347
    %v349 = vpop.f32.mrb[0].mxu0
    %350 = vmatprep.mubr.f32.mxu0 0.0
    %351 = vmatmul.mubr.f32.gmra.mrb[0].mxu0 %v162
    %v352 = vpop.f32.mrb[0].mxu0
    %v353 = vadd.f32 0.0, %v352
    %v354 = vpop.f32.mrb[0].mxu0
    %355 = vdwg.mxu0
    %356 = vmatprep.subr.mxu0 0.0
    %357 = vmatpush1.msra.mxu0 %v245
    %358 = vmatprep.subr.mxu0 0.0
    %359 = vmatpush1.msra.mxu0 %v246
    %360 = vmatprep.subr.mxu0 0.0
    %361 = vmatpush1.msra.mxu0 %v247
    %362 = vmatprep.subr.mxu0 0.0
    %363 = vmatpush1.msra.mxu0 %v248
    %364 = vmatprep.subr.mxu0 0.0
    %365 = vmatpush1.msra.mxu0 %v249
    %366 = vmatprep.subr.mxu0 0.0
    %367 = vmatpush1.msra.mxu0 %v250
    %368 = vmatprep.subr.mxu0 0.0
    %369 = vmatpush1.msra.mxu0 %v251
    %370 = vmatprep.subr.mxu0 0.0
    %371 = vmatpush1.msra.mxu0 %v252
    %372 = vmatprep.subr.mxu0 0.0
    %373 = vmatpush1.msra.mxu0 %v253
    %374 = vmatprep.subr.mxu0 0.0
    %375 = vmatpush1.msra.mxu0 %v254
    %376 = vmatprep.subr.mxu0 0.0
    %377 = vmatpush1.msra.mxu0 %v255
    %378 = vmatprep.subr.mxu0 0.0
    %379 = vmatpush1.msra.mxu0 %v256
    %380 = vmatprep.subr.mxu0 0.0
    %381 = vmatpush1.msra.mxu0 %v257
    %382 = vmatprep.subr.mxu0 0.0
    %383 = vmatpush1.msra.mxu0 %v258
    %384 = vmatprep.subr.mxu0 0.0
    %385 = vmatpush1.msra.mxu0 %v259
    %386 = vmatprep.subr.mxu0 0.0
    %387 = vmatpush1.msra.mxu0 %v260
    %388 = vmatprep.subr.mxu0 0.0
    %389 = vmatpush1.msra.mxu0 %v261
    %390 = vmatprep.subr.mxu0 0.0
    %391 = vmatpush1.msra.mxu0 %v262
    %392 = vmatprep.subr.mxu0 0.0
    %393 = vmatpush1.msra.mxu0 %v263
    %394 = vmatprep.subr.mxu0 0.0
    %395 = vmatpush1.msra.mxu0 %v264
    %396 = vmatprep.subr.mxu0 0.0
    %397 = vmatpush1.msra.mxu0 %v265
    %398 = vmatprep.subr.mxu0 0.0
    %399 = vmatpush1.msra.mxu0 %v266
    %400 = vmatprep.subr.mxu0 0.0
    %401 = vmatpush1.msra.mxu0 %v267
    %402 = vmatprep.subr.mxu0 0.0
    %403 = vmatpush1.msra.mxu0 %v268
    %404 = vmatprep.subr.mxu0 0.0
    %405 = vmatpush1.msra.mxu0 %v269
    %406 = vmatprep.subr.mxu0 0.0
    %407 = vmatpush1.msra.mxu0 %v270
    %408 = vmatprep.subr.mxu0 0.0
    %409 = vmatpush1.msra.mxu0 %v271
    %410 = vmatprep.subr.mxu0 0.0
    %411 = vmatpush1.msra.mxu0 %v272
    %412 = vmatprep.subr.mxu0 0.0
    %413 = vmatpush1.msra.mxu0 %v273
    %414 = vmatprep.subr.mxu0 0.0
    %415 = vmatpush1.msra.mxu0 %v274
    %416 = vmatprep.subr.mxu0 0.0
    %417 = vmatpush1.msra.mxu0 %v275
    %418 = vmatprep.subr.mxu0 0.0
    %419 = vmatpush1.msra.mxu0 %v276
    %420 = vmatprep.mubr.f32.mxu0 %v242
    %421 = vmatmul.mubr.f32.gmra.mrb[0].mxu0 %v241
    %v422 = vpop.f32.mrb[0].mxu0
    %v423 = vadd.f32 %v348, %v422
    %v424 = vpop.f32.mrb[0].mxu0
    %425 = vmatprep.mubr.f32.mxu0 %v244
    %426 = vmatmul.mubr.f32.gmra.mrb[0].mxu0 %v243
    %v427 = vpop.f32.mrb[0].mxu0
    %v428 = vadd.f32 %v353, %v427
    %v429 = vpop.f32.mrb[0].mxu0
    %430 = vdwg.mxu0
    %v431 = vld [vmem:[%s8] sm:$0x1]
    %v433 = vlaneseq
    %v434 = vshrl.u32 %v433, 7
    %v435 = vsub.s32 0, %v434
    %v436 = vrot.slane %v431, %v435
    %v438 = vadd.f32 %v423, %v436
    %v439 = vadd.f32 %v428, %v436
    %440 = vst.msk [vmem:[#allocation2] sm:$0xff] %vm157, %v438
    %441 = vst.msk [vmem:[#allocation2 + $0x8] sm:$0xff] %vm157, %v439
    // Predicated region
    $region38: #{tpu_custom_call.1} parent=1 // pred_check
      _
    $region39: #{tpu_custom_call.1} parent=1 // pred_check_branch
      %443 = sbr.rel (0) target = $region41
    $region40: #{tpu_custom_call.1} parent=1 // pred_region
      %s445 = ssub.s32 256, 256
      %446 = vsyncadd [#allocation3], %s445
      %s447 = sshll.u32 [#allocation2], 4
      %s448 = int_to_ptr.vmem [resolvable:$true] %s447
      %453 = dma.vmem_to_hbm [thread:$0]  %s448, 256, %s9, [#allocation3], 128, 128, 8
    $region41: #{tpu_custom_call.1} parent=1 // pred_fallthru
      _
    // Predicated region
    $region42: #{tpu_custom_call.1} parent=1 // pred_check
      _
    $region43: #{tpu_custom_call.1} parent=1 // pred_check_branch
      %455 = sbr.rel (0) target = $region45
    $region44: #{tpu_custom_call.1} parent=1 // pred_region
      %456 = dma.done [#allocation3], 256
    $region45: #{tpu_custom_call.1} parent=1 // pred_fallthru
      _
    %457 = vsyncpa [#allocation3], 1

</llo_original>
